<compile_context>
chip_gen: v5e
topology: v5e:2x2
jax: 0.10.0
libtpu: 0.0.40
codegen_flags: <defaults>
</compile_context>

<pallas_src>
import functools

import jax
import jax.numpy as jnp
from jax import lax
from jax.experimental import pallas as pl
from jax.experimental.pallas import tpu as pltpu


def _net_kernel(x_ref, w1t_ref, b1_ref, w2_ref, b2_ref, o_ref, *, use_bf16):
    x = x_ref[...]                       # (TB, D_in) f32
    b1 = b1_ref[...]                     # (1, 128)
    d_in = x.shape[1]

    if d_in <= 8:
        # VPU path: K is tiny, so skip MXU fill/drain.  Each term is an
        # outer-product broadcast FMA: (TB,1) * (1,128).
        h = b1
        for k in range(d_in):
            h = h + x[:, k:k + 1] * w1t_ref[k:k + 1, :]
    else:
        # MXU fallback for larger input_dim (w1t is (D_in, 128), no transpose).
        h = lax.dot_general(
            x, w1t_ref[...], (((1,), (0,)), ((), ())),
            preferred_element_type=jnp.float32) + b1

    h = jnp.maximum(h, 0.0)              # ReLU, (TB, 128)

    w2 = w2_ref[...]                     # (128, 128), PyTorch layout (out, in)
    if use_bf16:
        h = h.astype(jnp.bfloat16)
        w2 = w2.astype(jnp.bfloat16)

    # y = h @ w2^T without materializing a transpose: contract dim 1 with dim 1.
    y = lax.dot_general(
        h, w2, (((1,), (1,)), ((), ())),
        preferred_element_type=jnp.float32)
    o_ref[...] = (y + b2_ref[...]).astype(o_ref.dtype)


def prepare_params(w1, b1, w2, b2):
    """One-time layout prep (outside the per-call path).

    w1: (128, D_in) -> w1t (D_in, 128);  biases -> (1, 128);  w2 kept as-is.
    """
    h = w1.shape[0]
    return (jnp.asarray(w1).T, jnp.asarray(b1).reshape(1, h),
            jnp.asarray(w2), jnp.asarray(b2).reshape(1, h))


def net_forward(x, params, *, block_b=1024, use_bf16=False, out_dtype=None):
    """x: (B, D_in) f32; params from prepare_params()."""
    w1t, b1r, w2, b2r = params
    B, d_in = x.shape
    H = w2.shape[0]
    out_dtype = out_dtype or x.dtype
    kernel = functools.partial(_net_kernel, use_bf16=use_bf16)

    if B <= block_b:
        # Gridless: whole problem fits VMEM trivially; avoid pipeline bookkeeping.
        return pl.pallas_call(
            kernel,
            out_shape=jax.ShapeDtypeStruct((B, H), out_dtype),
            in_specs=[pl.BlockSpec(memory_space=pltpu.MemorySpace.VMEM)] * 5,
            out_specs=pl.BlockSpec(memory_space=pltpu.MemorySpace.VMEM),
        )(x, w1t, b1r, w2, b2r)

    # Batch-tiled path: x/out stream over the grid, weights/biases stay resident
    # (constant block index -> DMA'd once).
    tb = block_b
    return pl.pallas_call(
        kernel,
        out_shape=jax.ShapeDtypeStruct((B, H), out_dtype),
        grid=(pl.cdiv(B, tb),),
        in_specs=[
            pl.BlockSpec((tb, d_in), lambda i: (i, 0)),
            pl.BlockSpec(w1t.shape, lambda i: (0, 0)),
            pl.BlockSpec(b1r.shape, lambda i: (0, 0)),
            pl.BlockSpec(w2.shape, lambda i: (0, 0)),
            pl.BlockSpec(b2r.shape, lambda i: (0, 0)),
        ],
        out_specs=pl.BlockSpec((tb, H), lambda i: (i, 0)),
        compiler_params=pltpu.CompilerParams(
            dimension_semantics=("parallel",)),  # v7x: shard batch across 2 TCs
    )(x, w1t, b1r, w2, b2r)


def init_params(key, input_dim=2, hidden=128, fc2_in=128):
    """Deterministic init mimicking PyTorch nn.Linear default (uniform +-1/sqrt(fan_in))."""
    k1, k2, k3, k4 = jax.random.split(key, 4)
    bound1 = 1.0 / jnp.sqrt(jnp.float32(input_dim))
    bound2 = 1.0 / jnp.sqrt(jnp.float32(fc2_in))
    w1 = jax.random.uniform(k1, (hidden, input_dim), jnp.float32, -bound1, bound1)
    b1 = jax.random.uniform(k2, (hidden,),           jnp.float32, -bound1, bound1)
    w2 = jax.random.uniform(k3, (hidden, fc2_in),    jnp.float32, -bound2, bound2)
    b2 = jax.random.uniform(k4, (hidden,),           jnp.float32, -bound2, bound2)
    return w1, b1, w2, b2


def _reference(x, w1, b1, w2, b2):
    return jnp.maximum(x @ w1.T + b1, 0.0) @ w2.T + b2


if __name__ == "__main__":
    key = jax.random.PRNGKey(0)
    kx, kx2, kp = jax.random.split(key, 3)

    INPUT_DIM, HIDDEN = 2, 128
    w1, b1, w2, b2 = init_params(kp, input_dim=INPUT_DIM, hidden=HIDDEN, fc2_in=HIDDEN)
    params = prepare_params(w1, b1, w2, b2)   # one-time layout prep

    # --- small batch: gridless path ---
    B = 8
    x = jax.random.normal(kx, (B, INPUT_DIM), jnp.float32)
    out = jax.block_until_ready(net_forward(x, params))
    ref = _reference(x, w1, b1, w2, b2)
    assert out.shape == (B, HIDDEN)
    assert jnp.allclose(out, ref, atol=1e-4, rtol=1e-4)

    # --- larger batch: batch-tiled path (grid over B, resident weights) ---
    B2, TB = 256, 128
    x2 = jax.random.normal(kx2, (B2, INPUT_DIM), jnp.float32)
    out2 = jax.block_until_ready(net_forward(x2, params, block_b=TB))
    ref2 = _reference(x2, w1, b1, w2, b2)
    assert out2.shape == (B2, HIDDEN)
    assert jnp.allclose(out2, ref2, atol=1e-4, rtol=1e-4)

    # --- optional bf16-operand fc_2 matmul (f32 accumulation), looser tolerance ---
    out3 = jax.block_until_ready(net_forward(x2, params, block_b=TB, use_bf16=True))
    assert jnp.allclose(out3, ref2, atol=3e-2, rtol=3e-2)

    print("KERNEL_OK")
</pallas_src>

<mosaic_0001>
module attributes {stable_mosaic.version = 11 : i64} {
  func.func @_net_kernel(%arg0: memref<8x2xf32, #tpu.memory_space<vmem>>, %arg1: memref<2x128xf32, #tpu.memory_space<vmem>>, %arg2: memref<1x128xf32, #tpu.memory_space<vmem>>, %arg3: memref<128x128xf32, #tpu.memory_space<vmem>>, %arg4: memref<1x128xf32, #tpu.memory_space<vmem>>, %arg5: memref<8x128xf32, #tpu.memory_space<vmem>>) attributes {dimension_semantics = [], scalar_prefetch = 0 : i64, scratch_operands = 0 : i64, tpu.core_type = #tpu.core_type<tc>} {
    %c0 = arith.constant 0 : index
    %c0_0 = arith.constant 0 : index
    %0 = vector.load %arg0[%c0, %c0_0] : memref<8x2xf32, #tpu.memory_space<vmem>>, vector<8x2xf32>
    %c0_1 = arith.constant 0 : index
    %c0_2 = arith.constant 0 : index
    %1 = vector.load %arg2[%c0_1, %c0_2] : memref<1x128xf32, #tpu.memory_space<vmem>>, vector<1x128xf32>
    %2 = vector.extract_strided_slice %0 {offsets = [0, 0], sizes = [8, 1], strides = [1, 1]} : vector<8x2xf32> to vector<8x1xf32>
    %c0_3 = arith.constant 0 : index
    %c0_4 = arith.constant 0 : index
    %3 = vector.load %arg1[%c0_3, %c0_4] : memref<2x128xf32, #tpu.memory_space<vmem>>, vector<1x128xf32>
    %4 = vector.broadcast %2 : vector<8x1xf32> to vector<8x128xf32>
    %5 = vector.broadcast %3 : vector<1x128xf32> to vector<8x128xf32>
    %6 = arith.mulf %4, %5 : vector<8x128xf32>
    %7 = vector.broadcast %1 : vector<1x128xf32> to vector<8x128xf32>
    %8 = arith.addf %7, %6 : vector<8x128xf32>
    %9 = vector.extract_strided_slice %0 {offsets = [0, 1], sizes = [8, 1], strides = [1, 1]} : vector<8x2xf32> to vector<8x1xf32>
    %c1 = arith.constant 1 : index
    %c0_5 = arith.constant 0 : index
    %10 = vector.load %arg1[%c1, %c0_5] : memref<2x128xf32, #tpu.memory_space<vmem>>, vector<1x128xf32>
    %11 = vector.broadcast %9 : vector<8x1xf32> to vector<8x128xf32>
    %12 = vector.broadcast %10 : vector<1x128xf32> to vector<8x128xf32>
    %13 = arith.mulf %11, %12 : vector<8x128xf32>
    %14 = arith.addf %8, %13 : vector<8x128xf32>
    %cst = arith.constant 0.000000e+00 : f32
    %15 = vector.broadcast %cst : f32 to vector<8x128xf32>
    %16 = arith.maximumf %14, %15 : vector<8x128xf32>
    %c0_6 = arith.constant 0 : index
    %c0_7 = arith.constant 0 : index
    %17 = vector.load %arg3[%c0_6, %c0_7] : memref<128x128xf32, #tpu.memory_space<vmem>>, vector<128x128xf32>
    %cst_8 = arith.constant dense<0.000000e+00> : vector<8x128xf32>
    %18 = tpu.matmul %16, %17, %cst_8 {dimension_numbers = #tpu.dot_dimension_numbers<[1], [1], [0], [0], [0, 0, 1, 0], [], []>} : vector<8x128xf32>, vector<128x128xf32>, vector<8x128xf32> -> vector<8x128xf32>
    %c0_9 = arith.constant 0 : index
    %c0_10 = arith.constant 0 : index
    %19 = vector.load %arg4[%c0_9, %c0_10] : memref<1x128xf32, #tpu.memory_space<vmem>>, vector<1x128xf32>
    %20 = vector.broadcast %19 : vector<1x128xf32> to vector<8x128xf32>
    %21 = arith.addf %18, %20 : vector<8x128xf32>
    %c0_11 = arith.constant 0 : index
    %c0_12 = arith.constant 0 : index
    %22 = vector.load %arg5[%c0_11, %c0_12] : memref<8x128xf32, #tpu.memory_space<vmem>>, vector<8x128xf32>
    tpu.vector_store %arg5[%c0_11, %c0_12], %21 {strides = array<i32>} : memref<8x128xf32, #tpu.memory_space<vmem>>, vector<8x128xf32>,
    return
  }
}

</mosaic_0001>

<llo_original>
// kernel: tpu_custom_call.1
$region0: #{tpu_custom_call.1}
  #allocation0 [shape = 'u32[]', space=smem, size = 0x4, offset = 0x4, fixed_abs, tag = 'smem constant byte address 0x4 - core index']
  #allocation1 [shape = 'u32[72,128]{1,0:T(1,128)}', space=vmem, size = 0x9000, scoped, tag = 'internal scratch']
  %s0 = inlined_call_operand.vmem [shape: f32[8,2], index: 0, kind: input, shape index: {}]
  %s1 = inlined_call_operand.vmem [shape: f32[2,128], index: 1, kind: input, shape index: {}]
  %s2 = inlined_call_operand.vmem [shape: f32[1,128], index: 2, kind: input, shape index: {}]
  %s3 = inlined_call_operand.hbm [shape: f32[128,128], index: 3, kind: input, shape index: {}]
  %s4 = inlined_call_operand.vmem [shape: f32[1,128], index: 4, kind: input, shape index: {}]
  %s5 = inlined_call_operand.hbm [shape: f32[8,128], index: 5, kind: output, shape index: {}]
  %s6 = sld [smem:[#allocation0]]
  $region34: #{tpu_custom_call.1} parent=0
    _
  %s8 = ssub.s32 1, %s6
  %s9 = scalar_select 0, %s8, %s6
  $region1: #{tpu_custom_call.1} parent=0
    #allocation2 [shape = 'u8[65536]{0}', space=vmem, size = 0x10000, scoped, tag = 'input window, operand 3, single buffered']
    #allocation3 [shape = 's32[1]{0}', space=sflag, size = 0x4, scoped, tag = 'scoped memory for tpu_custom_call.1']
    #allocation4 [shape = 's32[1]{0}', space=sflag, size = 0x4, scoped, tag = 'scoped memory for tpu_custom_call.1']
    #allocation5 [shape = 'u8[4096]{0}', space=vmem, size = 0x1000, scoped, tag = 'output window, operand 0, single buffered']
    %10 = vsyncpa [#allocation3], 0
    %11 = vsyncpa [#allocation4], 0
    // Predicated region
    $region2: #{tpu_custom_call.1} parent=1 // pred_check
      _
    $region3: #{tpu_custom_call.1} parent=1 // pred_check_branch
      %13 = sbr.rel (0) target = $region5
    $region4: #{tpu_custom_call.1} parent=1 // pred_region
      _
    $region5: #{tpu_custom_call.1} parent=1 // pred_fallthru
      _
    // Predicated region
    $region6: #{tpu_custom_call.1} parent=1 // pred_check
      _
    $region7: #{tpu_custom_call.1} parent=1 // pred_check_branch
      %15 = sbr.rel (0) target = $region9
    $region8: #{tpu_custom_call.1} parent=1 // pred_region
      _
    $region9: #{tpu_custom_call.1} parent=1 // pred_fallthru
      _
    // Predicated region
    $region10: #{tpu_custom_call.1} parent=1 // pred_check
      _
    $region11: #{tpu_custom_call.1} parent=1 // pred_check_branch
      %17 = sbr.rel (0) target = $region13
    $region12: #{tpu_custom_call.1} parent=1 // pred_region
      _
    $region13: #{tpu_custom_call.1} parent=1 // pred_fallthru
      _
    // Predicated region
    $region14: #{tpu_custom_call.1} parent=1 // pred_check
      _
    $region15: #{tpu_custom_call.1} parent=1 // pred_check_branch
      %19 = sbr.rel (0) target = $region17
    $region16: #{tpu_custom_call.1} parent=1 // pred_region
      %21 = vsyncadd [#allocation3], 0
      %s22 = sshll.u32 %s3, 4
      %s23 = int_to_ptr.hbm [resolvable:$true] %s22
      %s24 = sshll.u32 [#allocation2], 4
      %s25 = int_to_ptr.vmem [resolvable:$true] %s24
      %30 = dma.hbm_to_vmem [thread:$0]  %s23, 2048, %s25, [#allocation3], 128, 128, 8
    $region17: #{tpu_custom_call.1} parent=1 // pred_fallthru
      _
    // Predicated region
    $region18: #{tpu_custom_call.1} parent=1 // pred_check
      _
    $region19: #{tpu_custom_call.1} parent=1 // pred_check_branch
      %32 = sbr.rel (0) target = $region21
    $region20: #{tpu_custom_call.1} parent=1 // pred_region
      _
    $region21: #{tpu_custom_call.1} parent=1 // pred_fallthru
      _
    // Predicated region
    $region22: #{tpu_custom_call.1} parent=1 // pred_check
      _
    $region23: #{tpu_custom_call.1} parent=1 // pred_check_branch
      %34 = sbr.rel (0) target = $region25
    $region24: #{tpu_custom_call.1} parent=1 // pred_region
      %36 = dma.done [#allocation3], 2048
    $region25: #{tpu_custom_call.1} parent=1 // pred_fallthru
      _
    %v37 = vld [vmem:[%s0] sm:$0xff]
    %v38 = vld [vmem:[%s2] sm:$0x1]
    %v39 = vld [vmem:[%s1] sm:$0x1]
    %41 = vset.pattern.permute.xlu0 0
    %42 = vperm.xlu0 %41, %v37
    %v43 = vpop.permute.xlu0 %42
    %v45 = vperm.slane %v39, 0
    %v46 = vmul.f32 %v43, %v45
    %v48 = vperm.slane %v38, 0
    %v50 = vadd.f32 %v48, %v46
    %v51 = vld [vmem:[%s1 + $0x1] sm:$0x1]
    %52 = vset.pattern.permute.xlu0 1
    %53 = vperm.xlu0 %52, %v37
    %v54 = vpop.permute.xlu0 %53
    %v56 = vperm.slane %v51, 0
    %v57 = vmul.f32 %v54, %v56
    %v58 = vadd.f32 %v50, %v57
    %v59 = vmax.f32 %v58, 0.0
    %v60 = vld [vmem:[#allocation2] sm:$0xff]
    %v61 = vld [vmem:[#allocation2 + $0x8] sm:$0xff]
    %v62 = vld [vmem:[#allocation2 + $0x10] sm:$0xff]
    %v63 = vld [vmem:[#allocation2 + $0x18] sm:$0xff]
    %v64 = vld [vmem:[#allocation2 + $0x20] sm:$0xff]
    %v65 = vld [vmem:[#allocation2 + $0x28] sm:$0xff]
    %v66 = vld [vmem:[#allocation2 + $0x30] sm:$0xff]
    %v67 = vld [vmem:[#allocation2 + $0x38] sm:$0xff]
    %v68 = vld [vmem:[#allocation2 + $0x40] sm:$0xff]
    %v69 = vld [vmem:[#allocation2 + $0x48] sm:$0xff]
    %v70 = vld [vmem:[#allocation2 + $0x50] sm:$0xff]
    %v71 = vld [vmem:[#allocation2 + $0x58] sm:$0xff]
    %v72 = vld [vmem:[#allocation2 + $0x60] sm:$0xff]
    %v73 = vld [vmem:[#allocation2 + $0x68] sm:$0xff]
    %v74 = vld [vmem:[#allocation2 + $0x70] sm:$0xff]
    %v75 = vld [vmem:[#allocation2 + $0x78] sm:$0xff]
    %v76 = vld [vmem:[%s4] sm:$0x1]
    %v78 = vperm.slane %v76, 0
    %80 = vmatpush.xpose.msra.mxu0 %v75
    %81 = vmatpush.xpose.msra.mxu0 %v74
    %82 = vmatpush.xpose.msra.mxu0 %v73
    %83 = vmatpush.xpose.msra.mxu0 %v72
    %84 = vmatpush.xpose.msra.mxu0 %v71
    %85 = vmatpush.xpose.msra.mxu0 %v70
    %86 = vmatpush.xpose.msra.mxu0 %v69
    %87 = vmatpush.xpose.msra.mxu0 %v68
    %88 = vmatpush.xpose.msra.mxu0 %v67
    %89 = vmatpush.xpose.msra.mxu0 %v66
    %90 = vmatpush.xpose.msra.mxu0 %v65
    %91 = vmatpush.xpose.msra.mxu0 %v64
    %92 = vmatpush.xpose.msra.mxu0 %v63
    %93 = vmatpush.xpose.msra.mxu0 %v62
    %94 = vmatpush.xpose.msra.mxu0 %v61
    %95 = vmatpush.xpose.msra.mxu0 %v60
    %96 = vmatmul.f32.gmra.mxu0 %v59
    %v97 = vpop.f32.mrf.mxu0
    %v98 = vadd.f32 %v78, %v97
    %99 = vdwg.mxu0
    %100 = vst [vmem:[#allocation5] sm:$0xff] %v98
    // Predicated region
    $region26: #{tpu_custom_call.1} parent=1 // pred_check
      _
    $region27: #{tpu_custom_call.1} parent=1 // pred_check_branch
      %102 = sbr.rel (0) target = $region29
    $region28: #{tpu_custom_call.1} parent=1 // pred_region
      %104 = vsyncadd [#allocation4], 0
      %s106 = sshll.u32 [#allocation5], 4
      %s107 = int_to_ptr.vmem [resolvable:$true] %s106
      %s108 = sshll.u32 %s5, 4
      %s109 = int_to_ptr.hbm [resolvable:$true] %s108
      %111 = dma.vmem_to_hbm [thread:$0]  %s107, 128, %s109, [#allocation4]
    $region29: #{tpu_custom_call.1} parent=1 // pred_fallthru
      _
    // Predicated region
    $region30: #{tpu_custom_call.1} parent=1 // pred_check
      _
    $region31: #{tpu_custom_call.1} parent=1 // pred_check_branch
      %113 = sbr.rel (0) target = $region33
    $region32: #{tpu_custom_call.1} parent=1 // pred_region
      %115 = dma.done [#allocation4], 128
    $region33: #{tpu_custom_call.1} parent=1 // pred_fallthru
      _
    %116 = vsyncpa [#allocation3], 1
    %117 = vsyncpa [#allocation4], 1

</llo_original>
